<compile_context>
chip_gen: v6e
topology: v6e:2x2x1
jax: 0.10.0
libtpu: 0.0.40
codegen_flags: <defaults>
</compile_context>

<pallas_src>
import functools

import jax
import jax.numpy as jnp
from jax import lax
from jax.experimental import pallas as pl
from jax.experimental.pallas import tpu as pltpu


# --------------------------------------------------------------------------
# helpers
# --------------------------------------------------------------------------
def _apply_activation(acc, activation):
    # acc is float32; activation runs in f32 on the VPU/EUP.
    if activation == "relu":
        return jnp.maximum(acc, 0.0)
    if activation == "sigmoid":
        return 1.0 / (1.0 + jnp.exp(-acc))
    if activation == "linear":
        return acc
    raise RuntimeError("Not expected activation flag !!!")


def _vmem_limit_bytes():
    # Generation-aware VMEM budget: ~48 MiB on v7x (64 MiB physical),
    # ~100 MiB on v5e/v6e (128 MiB physical).  Conservative default if the
    # hardware query is unavailable.
    cap = None
    try:
        cap = getattr(pltpu.get_tpu_info(), "vmem_capacity_bytes", None)
    except Exception:
        cap = None
    if not cap:
        cap = 64 * 1024 * 1024
    return int(min(cap - 16 * 1024 * 1024, 100 * 1024 * 1024))


def _pick_band_rows(H, W, halo, max_band_elems):
    """Rows per output band for the k>1 path.

    Constraints: divides H, gives a lane-dense flat store (R*W % 128 == 0),
    and is >= the halo row count so in-kernel halo reads stay in bounds.
    Falls back to a single band (R = H) when no such divisor exists.
    """
    cands = [r for r in range(1, H + 1)
             if H % r == 0 and (r * W) % 128 == 0 and r >= halo]
    if not cands:
        return H
    under = [r for r in cands if r * W <= max_band_elems]
    return max(under) if under else min(cands)


def _pick_spatial_tile(S, desired):
    """Lane-dense (multiple of 128) tile for the 1x1 path; prefers a divisor
    of S so the last tile is stored unmasked."""
    desired = max(128, (desired // 128) * 128)
    if S <= desired:
        return S
    t = desired
    while t >= 128:
        if S % t == 0:
            return t
        t -= 128
    return desired  # partial last tile (masked tail stores) as a fallback


# --------------------------------------------------------------------------
# kernels
# --------------------------------------------------------------------------
def _conv1x1_kernel(x_ref, w_ref, o_ref, *, activation):
    # x_ref: (C_in, ts) f32   w_ref: (C_out, C_in) compute dtype
    # o_ref: (C_out, ts)
    x = x_ref[...].astype(w_ref.dtype)          # cast in-kernel (no HBM pass)
    acc = jnp.dot(w_ref[...], x, preferred_element_type=jnp.float32)
    o_ref[...] = _apply_activation(acc, activation).astype(o_ref.dtype)


def _convkxk_kernel(x_ref, w_ref, o_ref, slab_ref, stk_ref, *,
                    k, p, W, R, num_bands, lead, activation):
    # x_ref:    (C_in, H*W)       f32 resident image (same block for all bands)
    # w_ref:    (C_out, k*k*C_in) compute dtype, resident
    # o_ref:    (C_out, R*W)      output band block (lane-dense when R*W%128==0)
    # slab_ref: (C_in, lead + (R+2p)*W + p)  zero-padded flat band slab (VMEM)
    # stk_ref:  (k*k*C_in, R*W)   VMEM-only im2col (taps folded into matmul K)
    C_in = x_ref.shape[0]
    S = R * W
    L = (R + 2 * p) * W
    cdt = slab_ref.dtype
    d0 = lead                                   # slab offset of band row 0

    b = pl.program_id(1)
    y0 = b * R
    main_start = y0 * W
    if S % 128 == 0:
        main_start = pl.multiple_of(main_start, 128)

    # ---- build the zero-padded band slab in VMEM (no padded HBM copy) ----
    # Main R rows of this band (always valid).  Destination is 128-aligned
    # by construction of `lead`.
    slab_ref[:, d0 + p * W: d0 + (p + R) * W] = (
        x_ref[:, pl.ds(main_start, S)].astype(cdt))
    # Top halo rows: real data for b > 0, zeros for the first band.
    @pl.when(b == 0)
    def _():
        slab_ref[:, d0: d0 + p * W] = jnp.zeros((C_in, p * W), cdt)
    # Bottom halo rows: zeros for the last band, real data otherwise.
    @pl.when(b == num_bands - 1)
    def _():
        slab_ref[:, d0 + (p + R) * W: d0 + L] = jnp.zeros((C_in, p * W), cdt)
    if num_bands > 1:
        @pl.when(b > 0)
        def _():
            slab_ref[:, d0: d0 + p * W] = (
                x_ref[:, pl.ds((y0 - p) * W, p * W)].astype(cdt))

        @pl.when(b < num_bands - 1)
        def _():
            slab_ref[:, d0 + (p + R) * W: d0 + L] = (
                x_ref[:, pl.ds((y0 + R) * W, p * W)].astype(cdt))

    # ---- VMEM im2col: fold the k*k taps into the matmul K dimension ----
    # Flat layout trick: output position f = r*W + w for tap (di, dj) reads
    # slab position lead + f + di*W + dj - p.  Positions whose column
    # (w + dj - p) falls outside [0, W) would pick up the neighbouring row's
    # pixels, so they are masked to zero (per-dj static mask).
    colf = lax.broadcasted_iota(jnp.int32, (1, S), 1) % W
    for dj in range(k):
        valid = (colf >= (p - dj)) & (colf < (W + p - dj))
        for di in range(k):
            t = di * k + dj
            start = d0 + di * W + dj - p
            patch = slab_ref[:, start: start + S]
            stk_ref[t * C_in:(t + 1) * C_in, :] = jnp.where(
                valid, patch, jnp.zeros_like(patch))

    # Single MXU matmul per band: K = k*k*C_in, f32 accumulation in the MXU
    # (uses the MRB in-place accumulation on v7x), no VMEM acc RMW per tap.
    acc = jnp.dot(w_ref[...], stk_ref[...], preferred_element_type=jnp.float32)
    o_ref[...] = _apply_activation(acc, activation).astype(o_ref.dtype)


# --------------------------------------------------------------------------
# wrapper
# --------------------------------------------------------------------------
def basic_conv2d(x, weight, *, activation="relu", norm="none",
                 spatial_tile=1024, max_band_elems=2048,
                 compute_dtype=jnp.bfloat16, out_dtype=None):
    """Forward pass of BasicConv2d.

    x:      (N, C_in, H, W)  NCHW, like PyTorch (typically float32)
    weight: (C_out, C_in, k, k)
    """
    if norm in ("bn", "in"):
        # TODO(synk): 'bn' / 'in' normalization branches not implemented.
        raise NotImplementedError("only norm='none' is implemented")
    if norm != "none":
        raise RuntimeError("Not expected norm flag !!!")
    if activation not in ("relu", "sigmoid", "linear"):
        raise RuntimeError("Not expected activation flag !!!")

    N, C_in, H, W = x.shape
    C_out, C_in_w, k, k2 = weight.shape
    assert C_in_w == C_in and k == k2 and k >= 1

    out_dtype = x.dtype if out_dtype is None else jnp.dtype(out_dtype)
    out_itemsize = jnp.dtype(out_dtype).itemsize
    vmem_limit = _vmem_limit_bytes()

    # ---------------- k == 1 fast path: per-image matmul -----------------
    if k == 1:
        S = H * W
        ts = _pick_spatial_tile(S, spatial_tile)
        grid = (N, pl.cdiv(S, ts))

        x3 = x.reshape(N, C_in, S)                       # free reshape, f32
        w2 = weight.reshape(C_out, C_in).astype(compute_dtype)

        cost = pl.CostEstimate(
            flops=int(2 * N * S * C_in * C_out),
            transcendentals=int(N * S * C_out) if activation == "sigmoid" else 0,
            bytes_accessed=int(x3.size * x3.dtype.itemsize
                               + w2.size * w2.dtype.itemsize
                               + N * C_out * S * out_itemsize),
        )

        # TODO(synk): sweep pipeline_mode=pl.Buffered(3) on the x spec on v7x.
        out3 = pl.pallas_call(
            functools.partial(_conv1x1_kernel, activation=activation),
            out_shape=jax.ShapeDtypeStruct((N, C_out, S), out_dtype),
            grid_spec=pltpu.PrefetchScalarGridSpec(
                num_scalar_prefetch=0,
                grid=grid,
                in_specs=[
                    pl.BlockSpec((None, C_in, ts), lambda n, s: (n, 0, s)),
                    pl.BlockSpec((C_out, C_in), lambda n, s: (0, 0)),
                ],
                out_specs=pl.BlockSpec((None, C_out, ts), lambda n, s: (n, 0, s)),
            ),
            compiler_params=pltpu.CompilerParams(
                dimension_semantics=("parallel", "parallel"),
                vmem_limit_bytes=vmem_limit),
            cost_estimate=cost,
        )(x3, w2)
        return out3.reshape(N, C_out, H, W)

    # ---------------- k > 1: row-band grid + VMEM im2col ------------------
    if k % 2 == 0:
        # TODO(synk): even kernel_size (output (H+1, W+1)) not implemented.
        raise NotImplementedError("only odd kernel_size > 1 is implemented")

    p = k // 2
    R = _pick_band_rows(H, W, p, max_band_elems)
    num_bands = H // R
    S = R * W
    L = (R + 2 * p) * W
    # Leading slab padding: >= p (for the most-negative tap offset) and sized
    # so the large per-band main copy lands 128-lane aligned.
    lead = p
    rem = (lead + p * W) % 128
    if rem:
        lead += 128 - rem
    L_ext = lead + L + p

    x3 = x.reshape(N, C_in, H * W)                        # free reshape, f32
    # K-axis order (di, dj, c_in) must match the in-kernel stacking order.
    w2 = jnp.transpose(weight, (0, 2, 3, 1)).reshape(C_out, k * k * C_in)
    w2 = w2.astype(compute_dtype)

    cost = pl.CostEstimate(
        flops=int(2 * N * H * W * C_in * k * k * C_out),
        transcendentals=int(N * H * W * C_out) if activation == "sigmoid" else 0,
        bytes_accessed=int(x3.size * x3.dtype.itemsize
                           + w2.size * w2.dtype.itemsize
                           + N * C_out * H * W * out_itemsize),
    )

    # TODO(synk): for very large C_in*H*W the full-image resident input block
    # would need halo'd manual DMA tiling instead of one block per image.
    out3 = pl.pallas_call(
        functools.partial(_convkxk_kernel, k=k, p=p, W=W, R=R,
                          num_bands=num_bands, lead=lead,
                          activation=activation),
        out_shape=jax.ShapeDtypeStruct((N, C_out, H * W), out_dtype),
        grid_spec=pltpu.PrefetchScalarGridSpec(
            num_scalar_prefetch=0,
            grid=(N, num_bands),
            in_specs=[
                pl.BlockSpec((None, C_in, H * W), lambda n, b: (n, 0, 0)),
                pl.BlockSpec((C_out, k * k * C_in), lambda n, b: (0, 0)),
            ],
            out_specs=pl.BlockSpec((None, C_out, S), lambda n, b: (n, 0, b)),
            scratch_shapes=[
                pltpu.VMEM((C_in, L_ext), compute_dtype),        # band slab
                pltpu.VMEM((k * k * C_in, S), compute_dtype),    # im2col stack
            ]),
        compiler_params=pltpu.CompilerParams(
            dimension_semantics=("parallel", "parallel"),
            vmem_limit_bytes=vmem_limit),
        cost_estimate=cost,
    )(x3, w2)
    return out3.reshape(N, C_out, H, W)


# --------------------------------------------------------------------------
# self-test
# --------------------------------------------------------------------------
if __name__ == "__main__":
    key = jax.random.PRNGKey(0)
    kx, kw1, kw3, kw5 = jax.random.split(key, 4)

    # BasicConv2d(in_channels=4, out_channels=8); defaults: kernel_size=1,
    # activation='relu', norm='none'
    N, C_in, H, W = 2, 4, 16, 16
    C_out = 8
    x = jax.random.normal(kx, (N, C_in, H, W), dtype=jnp.float32)

    def ref_conv(x, w, k, act):
        p = k // 2
        y = lax.conv_general_dilated(
            x, w, window_strides=(1, 1), padding=((p, p), (p, p)),
            dimension_numbers=("NCHW", "OIHW", "NCHW"))
        if act == "relu":
            return jnp.maximum(y, 0.0)
        if act == "sigmoid":
            return 1.0 / (1.0 + jnp.exp(-y))
        return y

    def check(out, ref):
        assert out.shape == ref.shape, (out.shape, ref.shape)
        err = float(jnp.max(jnp.abs(out - ref)))
        assert jnp.allclose(out, ref, atol=2e-2, rtol=2e-2), err

    # --- k = 1, relu (module defaults; fast path) -----------------------
    w1 = jax.random.normal(kw1, (C_out, C_in, 1, 1), dtype=jnp.float32) * 0.1
    o1 = jax.block_until_ready(basic_conv2d(x, w1, activation="relu"))
    check(o1, ref_conv(x, w1, 1, "relu"))

    # --- k = 3, sigmoid (default banding: single band per image) --------
    w3 = jax.random.normal(kw3, (C_out, C_in, 3, 3), dtype=jnp.float32) * 0.1
    o3 = jax.block_until_ready(basic_conv2d(x, w3, activation="sigmoid"))
    check(o3, ref_conv(x, w3, 3, "sigmoid"))

    # --- k = 3, relu, forced multi-band (exercises halo handling) -------
    o3b = jax.block_until_ready(
        basic_conv2d(x, w3, activation="relu", max_band_elems=128))
    check(o3b, ref_conv(x, w3, 3, "relu"))

    # --- k = 5, linear, forced multi-band with a 2-row halo -------------
    w5 = jax.random.normal(kw5, (C_out, C_in, 5, 5), dtype=jnp.float32) * 0.05
    o5 = jax.block_until_ready(
        basic_conv2d(x, w5, activation="linear", max_band_elems=128))
    check(o5, ref_conv(x, w5, 5, "linear"))

    print("KERNEL_OK")
</pallas_src>

<mosaic_0001>
module attributes {stable_mosaic.version = 11 : i64} {
  func.func @_conv1x1_kernel(%arg0: i32, %arg1: i32, %arg2: memref<1x4x256xf32, #tpu.memory_space<vmem>>, %arg3: memref<8x4xbf16, #tpu.memory_space<vmem>>, %arg4: memref<1x8x256xf32, #tpu.memory_space<vmem>>) attributes {dimension_semantics = [#tpu.dimension_semantics<parallel>, #tpu.dimension_semantics<parallel>], iteration_bounds = array<i64: 2, 1>, scalar_prefetch = 0 : i64, scratch_operands = 0 : i64, tpu.core_type = #tpu.core_type<tc>, window_params = [{transform_indices = @transform_0, window_bounds = array<i64: 1, 4, 256>}, {pipeline_mode = #tpu.pipeline_mode<synchronous>, transform_indices = @transform_1, window_bounds = array<i64: 8, 4>}, {transform_indices = @transform_2, window_bounds = array<i64: 1, 8, 256>}]} {
    %c0 = arith.constant 0 : index
    %c0_0 = arith.constant 0 : index
    %c0_1 = arith.constant 0 : index
    %0 = vector.load %arg2[%c0, %c0_0, %c0_1] : memref<1x4x256xf32, #tpu.memory_space<vmem>>, vector<1x4x256xf32>
    %1 = vector.shape_cast %0 : vector<1x4x256xf32> to vector<4x256xf32>
    %2 = arith.truncf %1 : vector<4x256xf32> to vector<4x256xbf16>
    %c0_2 = arith.constant 0 : index
    %c0_3 = arith.constant 0 : index
    %3 = vector.load %arg3[%c0_2, %c0_3] : memref<8x4xbf16, #tpu.memory_space<vmem>>, vector<8x4xbf16>
    %cst = arith.constant dense<0.000000e+00> : vector<8x256xf32>
    %4 = tpu.matmul %3, %2, %cst {dimension_numbers = #tpu.dot_dimension_numbers<[1], [0], [0], [1], [0, 0, 1, 1], [], []>} : vector<8x4xbf16>, vector<4x256xbf16>, vector<8x256xf32> -> vector<8x256xf32>
    %cst_4 = arith.constant 0.000000e+00 : f32
    %5 = vector.broadcast %cst_4 : f32 to vector<8x256xf32>
    %6 = arith.maximumf %4, %5 : vector<8x256xf32>
    %c0_5 = arith.constant 0 : index
    %c0_6 = arith.constant 0 : index
    %c0_7 = arith.constant 0 : index
    %7 = vector.load %arg4[%c0_5, %c0_6, %c0_7] : memref<1x8x256xf32, #tpu.memory_space<vmem>>, vector<1x8x256xf32>
    %8 = vector.shape_cast %7 : vector<1x8x256xf32> to vector<8x256xf32>
    %9 = vector.shape_cast %6 : vector<8x256xf32> to vector<1x8x256xf32>
    tpu.vector_store %arg4[%c0_5, %c0_6, %c0_7], %9 {strides = array<i32>} : memref<1x8x256xf32, #tpu.memory_space<vmem>>, vector<1x8x256xf32>,
    return
  }
  func.func @transform_0(%arg0: i32, %arg1: i32) -> (i32, i32, i32) {
    %c0_i32 = arith.constant 0 : i32
    %c0_i32_0 = arith.constant 0 : i32
    return %arg0, %c0_i32, %arg1 : i32, i32, i32
  }
  func.func @transform_1(%arg0: i32, %arg1: i32) -> (i32, i32) {
    %c0_i32 = arith.constant 0 : i32
    %c0_i32_0 = arith.constant 0 : i32
    %c0_i32_1 = arith.constant 0 : i32
    return %c0_i32, %c0_i32_0 : i32, i32
  }
  func.func @transform_2(%arg0: i32, %arg1: i32) -> (i32, i32, i32) {
    %c0_i32 = arith.constant 0 : i32
    %c0_i32_0 = arith.constant 0 : i32
    return %arg0, %c0_i32, %arg1 : i32, i32, i32
  }
}

</mosaic_0001>

<llo_original>
// kernel: tpu_custom_call.1
$region0: #{tpu_custom_call.1}
  #allocation0 [shape = 'u32[]', space=smem, size = 0x4, offset = 0x4, fixed_abs, tag = 'smem constant byte address 0x4 - core index']
  #allocation1 [shape = 'u32[144,128]{1,0:T(1,128)}', space=vmem, size = 0x12000, scoped, tag = 'internal scratch']
  %s0 = inlined_call_operand.hbm [shape: f32[2,4,256], index: 0, kind: input, shape index: {}]
  %s1 = inlined_call_operand.vmem [shape: bf16[8,4], index: 1, kind: input, shape index: {}]
  %s2 = inlined_call_operand.hbm [shape: f32[2,8,256], index: 2, kind: output, shape index: {}]
  %s3 = sld [smem:[#allocation0]]
  $region45: #{tpu_custom_call.1} parent=0
    _
  %s5 = ssub.s32 1, %s3
  %s6 = scalar_select 0, %s5, %s3
  $region1: #{tpu_custom_call.1} parent=0
    #allocation2 [shape = 'u8[8192]{0}', space=vmem, size = 0x2000, scoped, tag = 'input window, operand 0']
    #allocation3 [shape = 's32[2]{0}', space=sflag, size = 0x8, scoped, tag = 'scoped memory for tpu_custom_call.1']
    #allocation4 [shape = 's32[2]{0}', space=sflag, size = 0x8, scoped, tag = 'scoped memory for tpu_custom_call.1']
    #allocation5 [shape = 'u8[16384]{0}', space=vmem, size = 0x4000, scoped, tag = 'output window, operand 0']
    %7 = vsyncpa [#allocation3], 0
    %s8 = scalar_lea.sflag [#allocation3], 1
    %9 = vsyncpa %s8, 0
    %10 = vsyncpa [#allocation4], 0
    %s11 = scalar_lea.sflag [#allocation4], 1
    %12 = vsyncpa %s11, 0
    loop: start=0, step=1, limit=4
    $region2: #{tpu_custom_call.1} parent=1 // loop_pre_header
      _
    $region3: #{tpu_custom_call.1} parent=1 // loop_header
      %s14 = sphi 0, %s18
      %p15 = scmp.ge.s32.totalorder %s14, 4
      %s21 = sphi 0, %s33
      %s22 = sphi 0, %s29
      %s23 = sphi 0, %s21
      %s24 = sphi 0, %s22
      %s25 = sphi 0, %s23
      %s26 = sphi 0, %s24
      %s38 = sphi 0, %s40
      %s41 = sphi 0, %s38
      %s42 = sphi 0, %s41
      %s58 = sphi 0, %s42
      %s62 = sphi 0, %s62
      %s64 = sphi 0, %s62
      %s65 = sphi 0, %s64
      %s79 = sphi 0, %s65
      %s87 = sphi 0, %s89
      %s90 = sphi 0, %s87
      %s91 = sphi 0, %s90
      %s107 = sphi 0, %s91
    $region4: #{tpu_custom_call.1} parent=1 // loop_header_branch
      %17 = sbr.rel (%p15) target = $region8
    $region5: #{tpu_custom_call.1} parent=1 // loop_body
      %s19 = ssub.s32 %s14, 1
      %s20 = ssub.s32 %s14, 2
      %s27 = sadd.s32 1, %s22
      %p28 = scmp.ge.s32.totalorder %s27, 1
      %s29 = scalar_select %p28, 0, %s27
      %s30 = sadd.s32 1, %s21
      %s31 = scalar_select %p28, %s30, %s21
      %p32 = scmp.ge.s32.totalorder %s31, 2
      %s33 = scalar_select %p32, 0, %s31
      %s34 = ssub.s32 %s21, %s33
      %s35 = ssub.s32 %s22, %s29
      %s36 = sor.u32 %s34, %s35
      %p37 = scmp.eq.s32.totalorder %s36, 0
      %s39 = sadd.s32 %s38, 1
      %s40 = scalar_select %p37, %s38, %s39
      %p43 = pneg %p37
      %p44 = scmp.eq.s32.totalorder %s14, 1
      %p45 = por %p43, %p44
      %p46 = scmp.ne.s32.totalorder %s38, %s41
      %p47 = scmp.eq.s32.totalorder %s14, 0
      %p48 = por %p46, %p47
      %p49 = scmp.ne.s32.totalorder %s38, %s41
      %p50 = scmp.eq.s32.totalorder %s19, 1
      %p51 = por %p49, %p50
      %p52 = scmp.ne.s32.totalorder %s41, %s42
      %p53 = scmp.eq.s32.totalorder %s19, 0
      %p54 = por %p52, %p53
      %p55 = scmp.ne.s32.totalorder %s41, %s42
      %p56 = scmp.eq.s32.totalorder %s20, 1
      %p57 = por %p55, %p56
      %p59 = scmp.ne.s32.totalorder %s42, %s58
      %p60 = scmp.eq.s32.totalorder %s20, 0
      %p61 = por %p59, %p60
      %s63 = sadd.s32 %s62, 1
      %p66 = scmp.eq.s32.totalorder %s14, 1
      %p67 = scmp.ne.s32.totalorder %s62, %s64
      %p68 = scmp.eq.s32.totalorder %s14, 0
      %p69 = por %p67, %p68
      %p70 = scmp.ne.s32.totalorder %s62, %s64
      %p71 = scmp.eq.s32.totalorder %s19, 1
      %p72 = por %p70, %p71
      %p73 = scmp.ne.s32.totalorder %s64, %s65
      %p74 = scmp.eq.s32.totalorder %s19, 0
      %p75 = por %p73, %p74
      %p76 = scmp.ne.s32.totalorder %s64, %s65
      %p77 = scmp.eq.s32.totalorder %s20, 1
      %p78 = por %p76, %p77
      %p80 = scmp.ne.s32.totalorder %s65, %s79
      %p81 = scmp.eq.s32.totalorder %s20, 0
      %p82 = por %p80, %p81
      %s83 = ssub.s32 %s21, %s33
      %s84 = ssub.s32 %s22, %s29
      %s85 = sor.u32 %s83, %s84
      %p86 = scmp.eq.s32.totalorder %s85, 0
      %s88 = sadd.s32 %s87, 1
      %s89 = scalar_select %p86, %s87, %s88
      %p92 = pneg %p86
      %p93 = scmp.eq.s32.totalorder %s14, 1
      %p94 = por %p92, %p93
      %p95 = scmp.ne.s32.totalorder %s87, %s90
      %p96 = scmp.eq.s32.totalorder %s14, 0
      %p97 = por %p95, %p96
      %p98 = scmp.ne.s32.totalorder %s87, %s90
      %p99 = scmp.eq.s32.totalorder %s19, 1
      %p100 = por %p98, %p99
      %p101 = scmp.ne.s32.totalorder %s90, %s91
      %p102 = scmp.eq.s32.totalorder %s19, 0
      %p103 = por %p101, %p102
      %p104 = scmp.ne.s32.totalorder %s90, %s91
      %p105 = scmp.eq.s32.totalorder %s20, 1
      %p106 = por %p104, %p105
      %p108 = scmp.ne.s32.totalorder %s91, %s107
      %p109 = scmp.eq.s32.totalorder %s20, 0
      %p110 = por %p108, %p109
      %p111 = scmp.le.s32.totalorder 1, %s14
      %p112 = scmp.lt.s32.totalorder %s14, 3
      %p113 = pnand %p111, %p112
      %p114 = pneg %p113
      // Predicated region
      $region9: #{tpu_custom_call.1} parent=5 // pred_check
        _
      $region10: #{tpu_custom_call.1} parent=5 // pred_check_branch
        %116 = sbr.rel (%p113) target = $region12
      $region11: #{tpu_custom_call.1} parent=5 // pred_region
        %s117 = ssub.s32 %s14, 1
        // Predicated region
        $region13: #{tpu_custom_call.1} parent=11 // pred_check
          %p118 = pneg %p75
        $region14: #{tpu_custom_call.1} parent=11 // pred_check_branch
          %120 = sbr.rel (%p118) target = $region16
        $region15: #{tpu_custom_call.1} parent=11 // pred_region
          _
        $region16: #{tpu_custom_call.1} parent=11 // pred_fallthru
          _
      $region12: #{tpu_custom_call.1} parent=5 // pred_fallthru
        _
      %p121 = scmp.lt.s32.totalorder %s14, 2
      // Predicated region
      $region17: #{tpu_custom_call.1} parent=5 // pred_check
        %p122 = pneg %p121
      $region18: #{tpu_custom_call.1} parent=5 // pred_check_branch
        %124 = sbr.rel (%p122) target = $region20
      $region19: #{tpu_custom_call.1} parent=5 // pred_region
        // Predicated region
        $region21: #{tpu_custom_call.1} parent=19 // pred_check
          %p125 = pneg %p48
        $region22: #{tpu_custom_call.1} parent=19 // pred_check_branch
          %127 = sbr.rel (%p125) target = $region24
        $region23: #{tpu_custom_call.1} parent=19 // pred_region
          %s128 = sand.u32 %s38, 1
          %s129 = scalar_lea.sflag [#allocation3], %s128
          %s130 = sand.u32 %s38, 1
          %s131 = smul.addr %s130, 8
          %s132 = scalar_lea.vmem [#allocation2], %s131
          %s133 = smul.u32 2, %s22
          %s135 = ssub.s32 128, 128
          %136 = vsyncadd %s129, %s135
          %s137 = smul.addr %s21, 2
          %s138 = sadd.s32 %s133, %s137
          %s139 = smul.addr %s138, 64
          %s140 = scalar_lea.hbm %s0, %s139
          %s142 = sshll.u32 %s132, 4
          %s143 = int_to_ptr.vmem [resolvable:$true] %s142
          %145 = dma.hbm_to_vmem [thread:$0]  %s140, 128, %s143, %s129
        $region24: #{tpu_custom_call.1} parent=19 // pred_fallthru
          _
      $region20: #{tpu_custom_call.1} parent=5 // pred_fallthru
        _
      %p146 = scmp.le.s32.totalorder 1, %s14
      %p147 = scmp.lt.s32.totalorder %s14, 3
      %p148 = pnand %p146, %p147
      %p149 = pneg %p148
      // Predicated region
      $region25: #{tpu_custom_call.1} parent=5 // pred_check
        _
      $region26: #{tpu_custom_call.1} parent=5 // pred_check_branch
        %151 = sbr.rel (%p148) target = $region28
      $region27: #{tpu_custom_call.1} parent=5 // pred_region
        %s152 = ssub.s32 %s14, 1
        %s153 = sand.u32 %s41, 1
        %s154 = scalar_lea.sflag [#allocation3], %s153
        %s155 = sand.u32 %s41, 1
        %s156 = smul.addr %s155, 8
        %s157 = scalar_lea.vmem [#allocation2], %s156
        // Predicated region
        $region29: #{tpu_custom_call.1} parent=27 // pred_check
          %p158 = pneg %p54
        $region30: #{tpu_custom_call.1} parent=27 // pred_check_branch
          %160 = sbr.rel (%p158) target = $region32
        $region31: #{tpu_custom_call.1} parent=27 // pred_region
          %161 = dma.done %s154, 128
        $region32: #{tpu_custom_call.1} parent=27 // pred_fallthru
          _
        %s162 = sand.u32 %s41, 1
        %s163 = scalar_lea.sflag [#allocation3], %s162
        %s164 = sand.u32 %s41, 1
        %s165 = smul.addr %s164, 8
        %s166 = scalar_lea.vmem [#allocation2], %s165
        %p167 = pneg %p54
        %p168 = pneg %p51
        %p169 = pneg %p75
        %p170 = pneg %p72
        %p171 = pneg %p103
        %p172 = pneg %p100
        %s173 = sand.u32 %s90, 1
        %s174 = scalar_lea.sflag [#allocation4], %s173
        %s175 = sand.u32 %s90, 1
        %s176 = smul.addr %s175, 16
        %s177 = scalar_lea.vmem [#allocation5], %s176
        %s178 = smul.u32 2, %s24
        %s179 = smul.u32 2, %s24
        %v181 = vld [vmem:[%s157] sm:$0xff]
        %v183 = vcombine.high %v181, %v181
        %v185 = vpack.c.bf16 %v181, %v181
        %v186 = vpack.c.bf16 %v183, %v183
        %v187 = vld [vmem:[%s1] sm:$0xf]
        %vm188 = vcmask 31744
        %v190 = vsel %vm188, %v187, 0
        %vm192 = vcmask 1041408
        %v194 = vsel %vm192, %v185, 0
        %v197 = vsel %vm192, %v186, 0
        %199 = vmatprep.subr.bf16.mxu0 0
        %200 = vmatpush1.bf16.msra.mxu0 0
        %201 = vmatprep.subr.bf16.mxu0 0
        %202 = vmatpush1.bf16.msra.mxu0 0
        %203 = vmatprep.subr.bf16.mxu0 0
        %204 = vmatpush1.bf16.msra.mxu0 0
        %205 = vmatprep.subr.bf16.mxu0 0
        %206 = vmatpush1.bf16.msra.mxu0 0
        %207 = vmatprep.subr.bf16.mxu0 0
        %208 = vmatpush1.bf16.msra.mxu0 0
        %209 = vmatprep.subr.bf16.mxu0 0
        %210 = vmatpush1.bf16.msra.mxu0 0
        %211 = vmatprep.subr.bf16.mxu0 0
        %212 = vmatpush1.bf16.msra.mxu0 0
        %213 = vmatprep.subr.bf16.mxu0 %v197
        %214 = vmatpush1.bf16.msra.mxu0 %v194
        %215 = vmatprep.subr.bf16.mxu0 0
        %216 = vmatpush2.bf16.msra.mxu0 0
        %217 = vmatprep.subr.bf16.mxu0 0
        %218 = vmatpush2.bf16.msra.mxu0 0
        %219 = vmatprep.subr.bf16.mxu0 0
        %220 = vmatpush2.bf16.msra.mxu0 0
        %221 = vmatprep.subr.bf16.mxu0 0
        %222 = vmatpush2.bf16.msra.mxu0 0
        %223 = vmatprep.subr.bf16.mxu0 0
        %224 = vmatpush2.bf16.msra.mxu0 0
        %225 = vmatprep.subr.bf16.mxu0 0
        %226 = vmatpush2.bf16.msra.mxu0 0
        %227 = vmatprep.subr.bf16.mxu0 0
        %228 = vmatpush2.bf16.msra.mxu0 0
        %229 = vmatprep.subr.bf16.mxu0 0
        %230 = vmatpush2.bf16.msra.mxu0 0
        %231 = vmatprep.mubr.bf16.mxu0 0
        %232 = vmatmul.mubr.bf16.gmra.mxu0 %v190
        %v233 = vpop.f32.mrf.mxu0
        %v234 = vadd.f32 0.0, %v233
        %v235 = vpop.f32.mrf.mxu0
        %v236 = vadd.f32 0.0, %v235
        %v237 = vpop.f32.mrf.mxu0
        %v238 = vpop.f32.mrf.mxu0
        %239 = vdwg.mxu0
        %v240 = vmax.f32 %v234, 0.0
        %v241 = vmax.f32 %v236, 0.0
        %242 = vst [vmem:[%s177] sm:$0xff] %v240
        %243 = vst [vmem:[%s177 + $0x8] sm:$0xff] %v241
        %s244 = sand.u32 %s90, 1
        %s245 = scalar_lea.sflag [#allocation4], %s244
        %s246 = sand.u32 %s90, 1
        %s247 = smul.addr %s246, 16
        %s248 = scalar_lea.vmem [#allocation5], %s247
        // Predicated region
        $region33: #{tpu_custom_call.1} parent=27 // pred_check
          %p249 = pneg %p100
        $region34: #{tpu_custom_call.1} parent=27 // pred_check_branch
          %251 = sbr.rel (%p249) target = $region36
        $region35: #{tpu_custom_call.1} parent=27 // pred_region
          %s252 = smul.u32 2, %s24
          %s254 = ssub.s32 256, 256
          %255 = vsyncadd %s245, %s254
          %s256 = smul.addr %s23, 2
          %s257 = sadd.s32 %s252, %s256
          %s258 = smul.addr %s257, 128
          %s259 = scalar_lea.hbm %s2, %s258
          %s261 = sshll.u32 %s248, 4
          %s262 = int_to_ptr.vmem [resolvable:$true] %s261
          %264 = dma.vmem_to_hbm [thread:$0]  %s262, 256, %s259, %s245
        $region36: #{tpu_custom_call.1} parent=27 // pred_fallthru
          _
      $region28: #{tpu_custom_call.1} parent=5 // pred_fallthru
        _
      %p265 = scmp.le.s32.totalorder 2, %s14
      // Predicated region
      $region37: #{tpu_custom_call.1} parent=5 // pred_check
        %p266 = pneg %p265
      $region38: #{tpu_custom_call.1} parent=5 // pred_check_branch
        %268 = sbr.rel (%p266) target = $region40
      $region39: #{tpu_custom_call.1} parent=5 // pred_region
        %s269 = ssub.s32 %s14, 2
        // Predicated region
        $region41: #{tpu_custom_call.1} parent=39 // pred_check
          %p270 = pneg %p106
        $region42: #{tpu_custom_call.1} parent=39 // pred_check_branch
          %272 = sbr.rel (%p270) target = $region44
        $region43: #{tpu_custom_call.1} parent=39 // pred_region
          %s273 = sand.u32 %s91, 1
          %s274 = scalar_lea.sflag [#allocation4], %s273
          %s275 = sand.u32 %s91, 1
          %s276 = smul.addr %s275, 16
          %s277 = scalar_lea.vmem [#allocation5], %s276
          %278 = dma.done %s274, 256
        $region44: #{tpu_custom_call.1} parent=39 // pred_fallthru
          _
      $region40: #{tpu_custom_call.1} parent=5 // pred_fallthru
        _
    $region6: #{tpu_custom_call.1} parent=1 // loop_footer
      %s18 = sadd.s32 1, %s14
    $region7: #{tpu_custom_call.1} parent=1 // loop_footer_branch
      %13 = sbr.rel target = $region3
    $region8: #{tpu_custom_call.1} parent=1 // loop_exit
      _
    %279 = vsyncpa [#allocation3], 1
    %s280 = scalar_lea.sflag [#allocation3], 1
    %281 = vsyncpa %s280, 1
    %282 = vsyncpa [#allocation4], 1
    %s283 = scalar_lea.sflag [#allocation4], 1
    %284 = vsyncpa %s283, 1

</llo_original>
